<compile_context>
chip_gen: v6e
topology: v6e:2x2x1
jax: 0.10.0
libtpu: 0.0.40
codegen_flags: <defaults>
</compile_context>

<pallas_src>
import jax
import jax.numpy as jnp
from jax.experimental import pallas as pl
from jax.experimental.pallas import tpu as pltpu  # noqa: F401  (TPU backend assumed)

LEAKY_SLOPE = 0.01  # torch.nn.functional.leaky_relu default


def _round_up(n, m):
    return ((n + m - 1) // m) * m


# ---------------- fused Pallas kernel (whole MLP) ----------------

def _make_mlp_kernel(num_layers, in_size, out_size, soft):
    """Kernel refs: (x, W_stack, b_stack, out); everything resident in VMEM.
    W_stack: (L, P, P) pre-transposed [in, out] tiles, b_stack: (L, 1, P)."""

    def kernel(x_ref, w_ref, b_ref, o_ref):
        h = x_ref[...]                                    # (B, in_size), f32
        for i in range(num_layers):
            if i > 0:
                # leaky_relu fused before every Linear after the first (VPU work,
                # co-issues with MXU pushes); slope < 1 so max(h, slope*h) == leaky_relu(h)
                h = jnp.maximum(h, LEAKY_SLOPE * h)
            w = w_ref[i]                                  # (P, P)
            if i == 0:
                w = w[:in_size, :]                        # only the valid rows for unpadded x
            h = jnp.dot(h, w, preferred_element_type=jnp.float32) + b_ref[i]
        if soft:
            # final "layer" is Softmax, preceded by leaky_relu
            h = jnp.maximum(h, LEAKY_SLOPE * h)
            # mask the zero-padded lanes so they do not contribute to the denominator
            col = jax.lax.broadcasted_iota(jnp.int32, h.shape, 1)
            h = jnp.where(col < out_size, h, -jnp.inf)
            m = jnp.max(h, axis=-1, keepdims=True)
            e = jnp.exp(h - m)                            # exp(-inf) = 0 on padded lanes
            h = e / jnp.sum(e, axis=-1, keepdims=True)    # exact divide (see header note)
        o_ref[...] = h[:, :out_size]                      # store only the valid lanes
    return kernel


def _full_spec(shape):
    # single block covering the whole (small) array, resident in VMEM
    return pl.BlockSpec(shape, lambda: (0,) * len(shape))


# ---------------- parameter prep (once, outside the hot path) ----------------

def init_params(key, in_size, out_size, hidden_layers):
    """Deterministic Kaiming-uniform-ish init matching nn.Linear shapes [out,in], [out]."""
    sizes = [in_size] + list(hidden_layers) + [out_size]
    params = []
    for i in range(len(sizes) - 1):
        fan_in, fan_out = sizes[i], sizes[i + 1]
        key, kw, kb = jax.random.split(key, 3)
        bound = 1.0 / jnp.sqrt(jnp.float32(fan_in))
        W = jax.random.uniform(kw, (fan_out, fan_in), jnp.float32, -bound, bound)
        b = jax.random.uniform(kb, (fan_out,), jnp.float32, -bound, bound)
        params.append((W, b))
    return params


def prep_params(params):
    """Pre-transpose nn.Linear weights [out,in] -> [in,out], zero-pad every layer to one
    uniform (P, P) lane-dense tile (P = 128-multiple covering all layer dims) and stack:
        W_stack: (L, P, P), b_stack: (L, 1, P).
    Padded rows/cols are zero, so padded lanes stay exactly 0 through the whole chain."""
    P = 128
    for W, _ in params:
        P = max(P, _round_up(W.shape[0], 128), _round_up(W.shape[1], 128))
    Ws, bs = [], []
    for W, b in params:
        fan_out, fan_in = W.shape
        Wt = (jnp.zeros((P, P), jnp.float32)
              .at[:fan_in, :fan_out].set(jnp.asarray(W, jnp.float32).T))
        bp = (jnp.zeros((1, P), jnp.float32)
              .at[0, :fan_out].set(jnp.asarray(b, jnp.float32)))
        Ws.append(Wt)
        bs.append(bp)
    return jnp.stack(Ws), jnp.stack(bs)


# ---------------- NeuralNet forward (jit'd wrapper around one pallas_call) ----------------

def neural_net_forward(x, w_stack, b_stack, *, out_size, soft=True):
    """Mirrors NeuralNet.forward:
       x = L0(x); for each subsequent layer: x = leaky_relu(x); x = layer(x)
       (with soft=True the last 'layer' is Softmax, so leaky_relu precedes it)."""
    # TODO(synk): PyTorch forward computes in float64; TPU has no native f64 -> float32.
    x = x.astype(jnp.float32)
    B, F = x.shape
    L = w_stack.shape[0]
    kernel = _make_mlp_kernel(L, F, out_size, soft)
    return pl.pallas_call(
        kernel,
        out_shape=jax.ShapeDtypeStruct((B, out_size), jnp.float32),
        grid=(),
        in_specs=[_full_spec(x.shape),
                  _full_spec(w_stack.shape),
                  _full_spec(b_stack.shape)],
        out_specs=_full_spec((B, out_size)),
    )(x, w_stack, b_stack)


# ---------------- main ----------------

if __name__ == "__main__":
    key = jax.random.PRNGKey(0)
    batch, in_size, out_size = 8, 32, 16
    hidden = [64, 48]

    kx, kp = jax.random.split(key)
    x = jax.random.normal(kx, (batch, in_size), jnp.float32)
    params = init_params(kp, in_size, out_size, hidden)
    w_stack, b_stack = prep_params(params)  # pre-transpose + pad + stack, once

    fwd = jax.jit(neural_net_forward, static_argnames=("out_size", "soft"))
    out = fwd(x, w_stack, b_stack, out_size=out_size, soft=True)
    out = jax.block_until_ready(out)

    # sanity check against a pure-JAX reference of the same forward (f32)
    ref = x.astype(jnp.float32)
    ref = ref @ params[0][0].T + params[0][1]
    for W, b in params[1:]:
        ref = jnp.where(ref >= 0, ref, LEAKY_SLOPE * ref)
        ref = ref @ W.T + b
    ref = jnp.where(ref >= 0, ref, LEAKY_SLOPE * ref)
    ref = jax.nn.softmax(ref, axis=-1)

    assert out.shape == (batch, out_size)
    assert jnp.allclose(out, ref, atol=2e-3, rtol=2e-3)
    assert jnp.allclose(jnp.sum(out, axis=-1), 1.0, atol=1e-3)

    print("KERNEL_OK")
</pallas_src>

<mosaic_0001>
module attributes {stable_mosaic.version = 11 : i64} {
  func.func @kernel(%arg0: memref<8x32xf32, #tpu.memory_space<vmem>>, %arg1: memref<3x128x128xf32, #tpu.memory_space<vmem>>, %arg2: memref<3x1x128xf32, #tpu.memory_space<vmem>>, %arg3: memref<8x16xf32, #tpu.memory_space<vmem>>) attributes {dimension_semantics = [], scalar_prefetch = 0 : i64, scratch_operands = 0 : i64, tpu.core_type = #tpu.core_type<tc>} {
    %c0 = arith.constant 0 : index
    %c0_0 = arith.constant 0 : index
    %0 = vector.load %arg0[%c0, %c0_0] : memref<8x32xf32, #tpu.memory_space<vmem>>, vector<8x32xf32>
    %c0_1 = arith.constant 0 : index
    %c0_2 = arith.constant 0 : index
    %c0_3 = arith.constant 0 : index
    %1 = vector.load %arg1[%c0_1, %c0_2, %c0_3] : memref<3x128x128xf32, #tpu.memory_space<vmem>>, vector<1x128x128xf32>
    %2 = vector.shape_cast %1 : vector<1x128x128xf32> to vector<128x128xf32>
    %3 = vector.extract_strided_slice %2 {offsets = [0, 0], sizes = [32, 128], strides = [1, 1]} : vector<128x128xf32> to vector<32x128xf32>
    %cst = arith.constant dense<0.000000e+00> : vector<8x128xf32>
    %4 = tpu.matmul %0, %3, %cst {dimension_numbers = #tpu.dot_dimension_numbers<[1], [0], [0], [1], [0, 0, 1, 1], [], []>} : vector<8x32xf32>, vector<32x128xf32>, vector<8x128xf32> -> vector<8x128xf32>
    %c0_4 = arith.constant 0 : index
    %c0_5 = arith.constant 0 : index
    %c0_6 = arith.constant 0 : index
    %5 = vector.load %arg2[%c0_4, %c0_5, %c0_6] : memref<3x1x128xf32, #tpu.memory_space<vmem>>, vector<1x1x128xf32>
    %6 = vector.shape_cast %5 : vector<1x1x128xf32> to vector<1x128xf32>
    %7 = vector.broadcast %6 : vector<1x128xf32> to vector<8x128xf32>
    %8 = arith.addf %4, %7 : vector<8x128xf32>
    %cst_7 = arith.constant 0.00999999977 : f32
    %9 = vector.broadcast %cst_7 : f32 to vector<8x128xf32>
    %10 = arith.mulf %9, %8 : vector<8x128xf32>
    %11 = arith.maximumf %8, %10 : vector<8x128xf32>
    %c1 = arith.constant 1 : index
    %c0_8 = arith.constant 0 : index
    %c0_9 = arith.constant 0 : index
    %12 = vector.load %arg1[%c1, %c0_8, %c0_9] : memref<3x128x128xf32, #tpu.memory_space<vmem>>, vector<1x128x128xf32>
    %13 = vector.shape_cast %12 : vector<1x128x128xf32> to vector<128x128xf32>
    %cst_10 = arith.constant dense<0.000000e+00> : vector<8x128xf32>
    %14 = tpu.matmul %11, %13, %cst_10 {dimension_numbers = #tpu.dot_dimension_numbers<[1], [0], [0], [1], [0, 0, 1, 1], [], []>} : vector<8x128xf32>, vector<128x128xf32>, vector<8x128xf32> -> vector<8x128xf32>
    %c1_11 = arith.constant 1 : index
    %c0_12 = arith.constant 0 : index
    %c0_13 = arith.constant 0 : index
    %15 = vector.load %arg2[%c1_11, %c0_12, %c0_13] : memref<3x1x128xf32, #tpu.memory_space<vmem>>, vector<1x1x128xf32>
    %16 = vector.shape_cast %15 : vector<1x1x128xf32> to vector<1x128xf32>
    %17 = vector.broadcast %16 : vector<1x128xf32> to vector<8x128xf32>
    %18 = arith.addf %14, %17 : vector<8x128xf32>
    %cst_14 = arith.constant 0.00999999977 : f32
    %19 = vector.broadcast %cst_14 : f32 to vector<8x128xf32>
    %20 = arith.mulf %19, %18 : vector<8x128xf32>
    %21 = arith.maximumf %18, %20 : vector<8x128xf32>
    %c2 = arith.constant 2 : index
    %c0_15 = arith.constant 0 : index
    %c0_16 = arith.constant 0 : index
    %22 = vector.load %arg1[%c2, %c0_15, %c0_16] : memref<3x128x128xf32, #tpu.memory_space<vmem>>, vector<1x128x128xf32>
    %23 = vector.shape_cast %22 : vector<1x128x128xf32> to vector<128x128xf32>
    %cst_17 = arith.constant dense<0.000000e+00> : vector<8x128xf32>
    %24 = tpu.matmul %21, %23, %cst_17 {dimension_numbers = #tpu.dot_dimension_numbers<[1], [0], [0], [1], [0, 0, 1, 1], [], []>} : vector<8x128xf32>, vector<128x128xf32>, vector<8x128xf32> -> vector<8x128xf32>
    %c2_18 = arith.constant 2 : index
    %c0_19 = arith.constant 0 : index
    %c0_20 = arith.constant 0 : index
    %25 = vector.load %arg2[%c2_18, %c0_19, %c0_20] : memref<3x1x128xf32, #tpu.memory_space<vmem>>, vector<1x1x128xf32>
    %26 = vector.shape_cast %25 : vector<1x1x128xf32> to vector<1x128xf32>
    %27 = vector.broadcast %26 : vector<1x128xf32> to vector<8x128xf32>
    %28 = arith.addf %24, %27 : vector<8x128xf32>
    %cst_21 = arith.constant 0.00999999977 : f32
    %29 = vector.broadcast %cst_21 : f32 to vector<8x128xf32>
    %30 = arith.mulf %29, %28 : vector<8x128xf32>
    %31 = arith.maximumf %28, %30 : vector<8x128xf32>
    %32 = tpu.iota {dimensions = array<i32: 1>} : vector<8x128xi32>
    %c16_i32 = arith.constant 16 : i32
    %33 = vector.broadcast %c16_i32 : i32 to vector<8x128xi32>
    %34 = arith.cmpi slt, %32, %33 : vector<8x128xi32>
    %cst_22 = arith.constant 0xFF800000 : f32
    %35 = vector.broadcast %cst_22 : f32 to vector<8x128xf32>
    %36 = arith.select %34, %31, %35 : vector<8x128xi1>, vector<8x128xf32>
    %cst_23 = arith.constant dense<0xFF800000> : vector<8xf32>
    %37 = vector.multi_reduction <maximumf>, %36, %cst_23 [1] : vector<8x128xf32> to vector<8xf32>
    %38 = vector.shape_cast %37 : vector<8xf32> to vector<8x1xf32>
    %39 = vector.broadcast %38 : vector<8x1xf32> to vector<8x128xf32>
    %40 = arith.subf %36, %39 : vector<8x128xf32>
    %41 = math.exp %40 : vector<8x128xf32>
    %cst_24 = arith.constant dense<0.000000e+00> : vector<8xf32>
    %42 = vector.multi_reduction <add>, %41, %cst_24 [1] : vector<8x128xf32> to vector<8xf32>
    %43 = vector.shape_cast %42 : vector<8xf32> to vector<8x1xf32>
    %44 = vector.broadcast %43 : vector<8x1xf32> to vector<8x128xf32>
    %45 = arith.divf %41, %44 : vector<8x128xf32>
    %46 = vector.extract_strided_slice %45 {offsets = [0, 0], sizes = [8, 16], strides = [1, 1]} : vector<8x128xf32> to vector<8x16xf32>
    %c0_25 = arith.constant 0 : index
    %c0_26 = arith.constant 0 : index
    %47 = vector.load %arg3[%c0_25, %c0_26] : memref<8x16xf32, #tpu.memory_space<vmem>>, vector<8x16xf32>
    tpu.vector_store %arg3[%c0_25, %c0_26], %46 {strides = array<i32>} : memref<8x16xf32, #tpu.memory_space<vmem>>, vector<8x16xf32>,
    return
  }
}

</mosaic_0001>

<llo_original>
// kernel: neural_net_forward.1
$region0: #{neural_net_forward.1}
  #allocation0 [shape = 'u32[]', space=smem, size = 0x4, offset = 0x4, fixed_abs, tag = 'smem constant byte address 0x4 - core index']
  #allocation1 [shape = 'u32[144,128]{1,0:T(1,128)}', space=vmem, size = 0x12000, scoped, tag = 'internal scratch']
  %s0 = inlined_call_operand.hbm [shape: f32[8,32], index: 0, kind: input, shape index: {}]
  %s1 = inlined_call_operand.hbm [shape: f32[3,128,128], index: 1, kind: input, shape index: {}]
  %s2 = inlined_call_operand.vmem [shape: f32[3,1,128], index: 2, kind: input, shape index: {}]
  %s3 = inlined_call_operand.hbm [shape: f32[8,16], index: 3, kind: output, shape index: {}]
  %s4 = sld [smem:[#allocation0]]
  $region30: #{neural_net_forward.1} parent=0
    _
  %s6 = ssub.s32 1, %s4
  %s7 = scalar_select 0, %s6, %s4
  $region1: #{neural_net_forward.1} parent=0
    #allocation2 [shape = 'u8[4096]{0}', space=vmem, size = 0x1000, scoped, tag = 'input window, operand 0, single buffered']
    #allocation3 [shape = 's32[1]{0}', space=sflag, size = 0x4, scoped, tag = 'scoped memory for neural_net_forward.1']
    #allocation4 [shape = 's32[1]{0}', space=sflag, size = 0x4, scoped, tag = 'scoped memory for neural_net_forward.1']
    #allocation5 [shape = 'u8[196608]{0}', space=vmem, size = 0x30000, scoped, tag = 'input window, operand 1, single buffered']
    #allocation6 [shape = 's32[1]{0}', space=sflag, size = 0x4, scoped, tag = 'scoped memory for neural_net_forward.1']
    #allocation7 [shape = 'u8[4096]{0}', space=vmem, size = 0x1000, scoped, tag = 'output window, operand 0, single buffered']
    %8 = vsyncpa [#allocation3], 0
    %9 = vsyncpa [#allocation6], 0
    %10 = vsyncpa [#allocation4], 0
    // Predicated region
    $region2: #{neural_net_forward.1} parent=1 // pred_check
      _
    $region3: #{neural_net_forward.1} parent=1 // pred_check_branch
      %12 = sbr.rel (0) target = $region5
    $region4: #{neural_net_forward.1} parent=1 // pred_region
      %s14 = ssub.s32 128, 128
      %15 = vsyncadd [#allocation3], %s14
      %s17 = sshll.u32 [#allocation2], 4
      %s18 = int_to_ptr.vmem [resolvable:$true] %s17
      %20 = dma.hbm_to_vmem [thread:$0]  %s0, 128, %s18, [#allocation3]
    $region5: #{neural_net_forward.1} parent=1 // pred_fallthru
      _
    // Predicated region
    $region6: #{neural_net_forward.1} parent=1 // pred_check
      _
    $region7: #{neural_net_forward.1} parent=1 // pred_check_branch
      %22 = sbr.rel (0) target = $region9
    $region8: #{neural_net_forward.1} parent=1 // pred_region
      %s24 = ssub.s32 6144, 6144
      %25 = vsyncadd [#allocation6], %s24
      %s26 = sshll.u32 [#allocation5], 4
      %s27 = int_to_ptr.vmem [resolvable:$true] %s26
      %32 = dma.hbm_to_vmem [thread:$0]  %s1, 6144, %s27, [#allocation6], 128, 128, 8
    $region9: #{neural_net_forward.1} parent=1 // pred_fallthru
      _
    // Predicated region
    $region10: #{neural_net_forward.1} parent=1 // pred_check
      _
    $region11: #{neural_net_forward.1} parent=1 // pred_check_branch
      %34 = sbr.rel (0) target = $region13
    $region12: #{neural_net_forward.1} parent=1 // pred_region
      _
    $region13: #{neural_net_forward.1} parent=1 // pred_fallthru
      _
    // Predicated region
    $region14: #{neural_net_forward.1} parent=1 // pred_check
      _
    $region15: #{neural_net_forward.1} parent=1 // pred_check_branch
      %36 = sbr.rel (0) target = $region17
    $region16: #{neural_net_forward.1} parent=1 // pred_region
      %37 = dma.done [#allocation3], 128
    $region17: #{neural_net_forward.1} parent=1 // pred_fallthru
      _
    // Predicated region
    $region18: #{neural_net_forward.1} parent=1 // pred_check
      _
    $region19: #{neural_net_forward.1} parent=1 // pred_check_branch
      %39 = sbr.rel (0) target = $region21
    $region20: #{neural_net_forward.1} parent=1 // pred_region
      %40 = dma.done [#allocation6], 6144
    $region21: #{neural_net_forward.1} parent=1 // pred_fallthru
      _
    %v41 = vld [vmem:[#allocation2] sm:$0xff]
    %v42 = vld [vmem:[#allocation5] sm:$0xff]
    %v43 = vld [vmem:[#allocation5 + $0x8] sm:$0xff]
    %v44 = vld [vmem:[#allocation5 + $0x10] sm:$0xff]
    %v45 = vld [vmem:[#allocation5 + $0x18] sm:$0xff]
    %v46 = vld [vmem:[%s2] sm:$0x1]
    %v48 = vlaneseq
    %v49 = vshrl.u32 %v48, 7
    %v50 = vsub.s32 0, %v49
    %v51 = vrot.slane %v46, %v50
    %vm53 = vcmask 261120
    %v55 = vsel %vm53, %v41, 0
    %57 = vmatprep.subr.mxu0 0.0
    %58 = vmatpush1.msra.mxu0 0.0
    %59 = vmatprep.subr.mxu0 0.0
    %60 = vmatpush1.msra.mxu0 0.0
    %61 = vmatprep.subr.mxu0 0.0
    %62 = vmatpush1.msra.mxu0 0.0
    %63 = vmatprep.subr.mxu0 0.0
    %64 = vmatpush1.msra.mxu0 0.0
    %65 = vmatprep.subr.mxu0 0.0
    %66 = vmatpush1.msra.mxu0 0.0
    %67 = vmatprep.subr.mxu0 0.0
    %68 = vmatpush1.msra.mxu0 0.0
    %69 = vmatprep.subr.mxu0 0.0
    %70 = vmatpush1.msra.mxu0 0.0
    %71 = vmatprep.subr.mxu0 0.0
    %72 = vmatpush1.msra.mxu0 0.0
    %73 = vmatprep.subr.mxu0 0.0
    %74 = vmatpush1.msra.mxu0 0.0
    %75 = vmatprep.subr.mxu0 0.0
    %76 = vmatpush1.msra.mxu0 0.0
    %77 = vmatprep.subr.mxu0 0.0
    %78 = vmatpush1.msra.mxu0 0.0
    %79 = vmatprep.subr.mxu0 0.0
    %80 = vmatpush1.msra.mxu0 0.0
    %81 = vmatprep.subr.mxu0 0.0
    %82 = vmatpush1.msra.mxu0 %v45
    %83 = vmatprep.subr.mxu0 0.0
    %84 = vmatpush1.msra.mxu0 %v44
    %85 = vmatprep.subr.mxu0 0.0
    %86 = vmatpush1.msra.mxu0 %v43
    %87 = vmatprep.subr.mxu0 0.0
    %88 = vmatpush1.msra.mxu0 %v42
    %89 = vmatprep.subr.mxu0 0.0
    %90 = vmatpush2.msra.mxu0 0.0
    %91 = vmatprep.subr.mxu0 0.0
    %92 = vmatpush2.msra.mxu0 0.0
    %93 = vmatprep.subr.mxu0 0.0
    %94 = vmatpush2.msra.mxu0 0.0
    %95 = vmatprep.subr.mxu0 0.0
    %96 = vmatpush2.msra.mxu0 0.0
    %97 = vmatprep.subr.mxu0 0.0
    %98 = vmatpush2.msra.mxu0 0.0
    %99 = vmatprep.subr.mxu0 0.0
    %100 = vmatpush2.msra.mxu0 0.0
    %101 = vmatprep.subr.mxu0 0.0
    %102 = vmatpush2.msra.mxu0 0.0
    %103 = vmatprep.subr.mxu0 0.0
    %104 = vmatpush2.msra.mxu0 0.0
    %105 = vmatprep.subr.mxu0 0.0
    %106 = vmatpush2.msra.mxu0 0.0
    %107 = vmatprep.subr.mxu0 0.0
    %108 = vmatpush2.msra.mxu0 0.0
    %109 = vmatprep.subr.mxu0 0.0
    %110 = vmatpush2.msra.mxu0 0.0
    %111 = vmatprep.subr.mxu0 0.0
    %112 = vmatpush2.msra.mxu0 0.0
    %113 = vmatprep.subr.mxu0 0.0
    %114 = vmatpush2.msra.mxu0 0.0
    %115 = vmatprep.subr.mxu0 0.0
    %116 = vmatpush2.msra.mxu0 0.0
    %117 = vmatprep.subr.mxu0 0.0
    %118 = vmatpush2.msra.mxu0 0.0
    %119 = vmatprep.subr.mxu0 0.0
    %120 = vmatpush2.msra.mxu0 0.0
    %121 = vmatprep.mubr.f32.mxu0 0.0
    %122 = vmatmul.mubr.f32.gmra.mxu0 %v55
    %v123 = vpop.f32.mrf.mxu0
    %v124 = vadd.f32 %v51, %v123
    %v125 = vpop.f32.mrf.mxu0
    %126 = vdwg.mxu0
    %v127 = vmul.f32 %v124, 0.01
    %v128 = vmax.f32 %v124, %v127
    %s129 = scalar_lea.vmem [#allocation5], 128
    %v130 = vld [vmem:[%s129] sm:$0xff]
    %v131 = vld [vmem:[%s129 + $0x8] sm:$0xff]
    %v132 = vld [vmem:[%s129 + $0x10] sm:$0xff]
    %v133 = vld [vmem:[%s129 + $0x18] sm:$0xff]
    %v134 = vld [vmem:[%s129 + $0x20] sm:$0xff]
    %v135 = vld [vmem:[%s129 + $0x28] sm:$0xff]
    %v136 = vld [vmem:[%s129 + $0x30] sm:$0xff]
    %v137 = vld [vmem:[%s129 + $0x38] sm:$0xff]
    %v138 = vld [vmem:[%s129 + $0x40] sm:$0xff]
    %v139 = vld [vmem:[%s129 + $0x48] sm:$0xff]
    %v140 = vld [vmem:[%s129 + $0x50] sm:$0xff]
    %v141 = vld [vmem:[%s129 + $0x58] sm:$0xff]
    %v142 = vld [vmem:[%s129 + $0x60] sm:$0xff]
    %v143 = vld [vmem:[%s129 + $0x68] sm:$0xff]
    %v144 = vld [vmem:[%s129 + $0x70] sm:$0xff]
    %v145 = vld [vmem:[%s129 + $0x78] sm:$0xff]
    %s146 = scalar_lea.vmem %s2, 1
    %v147 = vld [vmem:[%s146] sm:$0x1]
    %v149 = vlaneseq
    %v150 = vshrl.u32 %v149, 7
    %v151 = vsub.s32 0, %v150
    %v152 = vrot.slane %v147, %v151
    %154 = vmatprep.subr.mxu0 0.0
    %155 = vmatpush1.msra.mxu0 %v145
    %156 = vmatprep.subr.mxu0 0.0
    %157 = vmatpush1.msra.mxu0 %v144
    %158 = vmatprep.subr.mxu0 0.0
    %159 = vmatpush1.msra.mxu0 %v143
    %160 = vmatprep.subr.mxu0 0.0
    %161 = vmatpush1.msra.mxu0 %v142
    %162 = vmatprep.subr.mxu0 0.0
    %163 = vmatpush1.msra.mxu0 %v141
    %164 = vmatprep.subr.mxu0 0.0
    %165 = vmatpush1.msra.mxu0 %v140
    %166 = vmatprep.subr.mxu0 0.0
    %167 = vmatpush1.msra.mxu0 %v139
    %168 = vmatprep.subr.mxu0 0.0
    %169 = vmatpush1.msra.mxu0 %v138
    %170 = vmatprep.subr.mxu0 0.0
    %171 = vmatpush1.msra.mxu0 %v137
    %172 = vmatprep.subr.mxu0 0.0
    %173 = vmatpush1.msra.mxu0 %v136
    %174 = vmatprep.subr.mxu0 0.0
    %175 = vmatpush1.msra.mxu0 %v135
    %176 = vmatprep.subr.mxu0 0.0
    %177 = vmatpush1.msra.mxu0 %v134
    %178 = vmatprep.subr.mxu0 0.0
    %179 = vmatpush1.msra.mxu0 %v133
    %180 = vmatprep.subr.mxu0 0.0
    %181 = vmatpush1.msra.mxu0 %v132
    %182 = vmatprep.subr.mxu0 0.0
    %183 = vmatpush1.msra.mxu0 %v131
    %184 = vmatprep.subr.mxu0 0.0
    %185 = vmatpush1.msra.mxu0 %v130
    %186 = vmatprep.subr.mxu0 0.0
    %187 = vmatpush2.msra.mxu0 0.0
    %188 = vmatprep.subr.mxu0 0.0
    %189 = vmatpush2.msra.mxu0 0.0
    %190 = vmatprep.subr.mxu0 0.0
    %191 = vmatpush2.msra.mxu0 0.0
    %192 = vmatprep.subr.mxu0 0.0
    %193 = vmatpush2.msra.mxu0 0.0
    %194 = vmatprep.subr.mxu0 0.0
    %195 = vmatpush2.msra.mxu0 0.0
    %196 = vmatprep.subr.mxu0 0.0
    %197 = vmatpush2.msra.mxu0 0.0
    %198 = vmatprep.subr.mxu0 0.0
    %199 = vmatpush2.msra.mxu0 0.0
    %200 = vmatprep.subr.mxu0 0.0
    %201 = vmatpush2.msra.mxu0 0.0
    %202 = vmatprep.subr.mxu0 0.0
    %203 = vmatpush2.msra.mxu0 0.0
    %204 = vmatprep.subr.mxu0 0.0
    %205 = vmatpush2.msra.mxu0 0.0
    %206 = vmatprep.subr.mxu0 0.0
    %207 = vmatpush2.msra.mxu0 0.0
    %208 = vmatprep.subr.mxu0 0.0
    %209 = vmatpush2.msra.mxu0 0.0
    %210 = vmatprep.subr.mxu0 0.0
    %211 = vmatpush2.msra.mxu0 0.0
    %212 = vmatprep.subr.mxu0 0.0
    %213 = vmatpush2.msra.mxu0 0.0
    %214 = vmatprep.subr.mxu0 0.0
    %215 = vmatpush2.msra.mxu0 0.0
    %216 = vmatprep.subr.mxu0 0.0
    %217 = vmatpush2.msra.mxu0 0.0
    %218 = vmatprep.mubr.f32.mxu0 0.0
    %219 = vmatmul.mubr.f32.gmra.mxu0 %v128
    %v220 = vpop.f32.mrf.mxu0
    %v221 = vadd.f32 %v152, %v220
    %v222 = vpop.f32.mrf.mxu0
    %223 = vdwg.mxu0
    %v224 = vmul.f32 %v221, 0.01
    %v225 = vmax.f32 %v221, %v224
    %s226 = scalar_lea.vmem [#allocation5], 256
    %v227 = vld [vmem:[%s226] sm:$0xff]
    %v228 = vld [vmem:[%s226 + $0x8] sm:$0xff]
    %v229 = vld [vmem:[%s226 + $0x10] sm:$0xff]
    %v230 = vld [vmem:[%s226 + $0x18] sm:$0xff]
    %v231 = vld [vmem:[%s226 + $0x20] sm:$0xff]
    %v232 = vld [vmem:[%s226 + $0x28] sm:$0xff]
    %v233 = vld [vmem:[%s226 + $0x30] sm:$0xff]
    %v234 = vld [vmem:[%s226 + $0x38] sm:$0xff]
    %v235 = vld [vmem:[%s226 + $0x40] sm:$0xff]
    %v236 = vld [vmem:[%s226 + $0x48] sm:$0xff]
    %v237 = vld [vmem:[%s226 + $0x50] sm:$0xff]
    %v238 = vld [vmem:[%s226 + $0x58] sm:$0xff]
    %v239 = vld [vmem:[%s226 + $0x60] sm:$0xff]
    %v240 = vld [vmem:[%s226 + $0x68] sm:$0xff]
    %v241 = vld [vmem:[%s226 + $0x70] sm:$0xff]
    %v242 = vld [vmem:[%s226 + $0x78] sm:$0xff]
    %s243 = scalar_lea.vmem %s2, 2
    %v244 = vld [vmem:[%s243] sm:$0x1]
    %v246 = vlaneseq
    %v247 = vshrl.u32 %v246, 7
    %v248 = vsub.s32 0, %v247
    %v249 = vrot.slane %v244, %v248
    %251 = vmatprep.subr.mxu0 0.0
    %252 = vmatpush1.msra.mxu0 %v242
    %253 = vmatprep.subr.mxu0 0.0
    %254 = vmatpush1.msra.mxu0 %v241
    %255 = vmatprep.subr.mxu0 0.0
    %256 = vmatpush1.msra.mxu0 %v240
    %257 = vmatprep.subr.mxu0 0.0
    %258 = vmatpush1.msra.mxu0 %v239
    %259 = vmatprep.subr.mxu0 0.0
    %260 = vmatpush1.msra.mxu0 %v238
    %261 = vmatprep.subr.mxu0 0.0
    %262 = vmatpush1.msra.mxu0 %v237
    %263 = vmatprep.subr.mxu0 0.0
    %264 = vmatpush1.msra.mxu0 %v236
    %265 = vmatprep.subr.mxu0 0.0
    %266 = vmatpush1.msra.mxu0 %v235
    %267 = vmatprep.subr.mxu0 0.0
    %268 = vmatpush1.msra.mxu0 %v234
    %269 = vmatprep.subr.mxu0 0.0
    %270 = vmatpush1.msra.mxu0 %v233
    %271 = vmatprep.subr.mxu0 0.0
    %272 = vmatpush1.msra.mxu0 %v232
    %273 = vmatprep.subr.mxu0 0.0
    %274 = vmatpush1.msra.mxu0 %v231
    %275 = vmatprep.subr.mxu0 0.0
    %276 = vmatpush1.msra.mxu0 %v230
    %277 = vmatprep.subr.mxu0 0.0
    %278 = vmatpush1.msra.mxu0 %v229
    %279 = vmatprep.subr.mxu0 0.0
    %280 = vmatpush1.msra.mxu0 %v228
    %281 = vmatprep.subr.mxu0 0.0
    %282 = vmatpush1.msra.mxu0 %v227
    %283 = vmatprep.subr.mxu0 0.0
    %284 = vmatpush2.msra.mxu0 0.0
    %285 = vmatprep.subr.mxu0 0.0
    %286 = vmatpush2.msra.mxu0 0.0
    %287 = vmatprep.subr.mxu0 0.0
    %288 = vmatpush2.msra.mxu0 0.0
    %289 = vmatprep.subr.mxu0 0.0
    %290 = vmatpush2.msra.mxu0 0.0
    %291 = vmatprep.subr.mxu0 0.0
    %292 = vmatpush2.msra.mxu0 0.0
    %293 = vmatprep.subr.mxu0 0.0
    %294 = vmatpush2.msra.mxu0 0.0
    %295 = vmatprep.subr.mxu0 0.0
    %296 = vmatpush2.msra.mxu0 0.0
    %297 = vmatprep.subr.mxu0 0.0
    %298 = vmatpush2.msra.mxu0 0.0
    %299 = vmatprep.subr.mxu0 0.0
    %300 = vmatpush2.msra.mxu0 0.0
    %301 = vmatprep.subr.mxu0 0.0
    %302 = vmatpush2.msra.mxu0 0.0
    %303 = vmatprep.subr.mxu0 0.0
    %304 = vmatpush2.msra.mxu0 0.0
    %305 = vmatprep.subr.mxu0 0.0
    %306 = vmatpush2.msra.mxu0 0.0
    %307 = vmatprep.subr.mxu0 0.0
    %308 = vmatpush2.msra.mxu0 0.0
    %309 = vmatprep.subr.mxu0 0.0
    %310 = vmatpush2.msra.mxu0 0.0
    %311 = vmatprep.subr.mxu0 0.0
    %312 = vmatpush2.msra.mxu0 0.0
    %313 = vmatprep.subr.mxu0 0.0
    %314 = vmatpush2.msra.mxu0 0.0
    %315 = vmatprep.mubr.f32.mxu0 0.0
    %316 = vmatmul.mubr.f32.gmra.mxu0 %v225
    %v317 = vpop.f32.mrf.mxu0
    %v318 = vadd.f32 %v249, %v317
    %v319 = vpop.f32.mrf.mxu0
    %320 = vdwg.mxu0
    %v321 = vmul.f32 %v318, 0.01
    %v322 = vmax.f32 %v318, %v321
    %v323 = vlaneseq
    %v324 = vand.u32 %v323, 127
    %vm325 = vcmp.lt.s32.totalorder %v324, 16
    %v326 = vsel %vm325, %v322, -inf
    %327 = vmax.xlane.f32.xlu0 %v326
    %v328 = vpop.xlane.xlu0 %327
    %v329 = vsub.f32 %v326, %v328
    %v330 = vmul.f32 %v329, 1.442695
    %v331 = vpow.pop %v330
    %332 = vadd.xlane.f32.xlu0 %v331
    %v333 = vpop.xlane.xlu0 %332
    %v334 = vrcp.pop %v333
    %v335 = vmul.f32 %v331, %v334
    %vm336 = vcmask 130048
    %337 = vst.msk [vmem:[#allocation7] sm:$0xff] %vm336, %v335
    // Predicated region
    $region22: #{neural_net_forward.1} parent=1 // pred_check
      _
    $region23: #{neural_net_forward.1} parent=1 // pred_check_branch
      %339 = sbr.rel (0) target = $region25
    $region24: #{neural_net_forward.1} parent=1 // pred_region
      %s341 = ssub.s32 128, 128
      %342 = vsyncadd [#allocation4], %s341
      %s344 = sshll.u32 [#allocation7], 4
      %s345 = int_to_ptr.vmem [resolvable:$true] %s344
      %347 = dma.vmem_to_hbm [thread:$0]  %s345, 128, %s3, [#allocation4]
    $region25: #{neural_net_forward.1} parent=1 // pred_fallthru
      _
    // Predicated region
    $region26: #{neural_net_forward.1} parent=1 // pred_check
      _
    $region27: #{neural_net_forward.1} parent=1 // pred_check_branch
      %349 = sbr.rel (0) target = $region29
    $region28: #{neural_net_forward.1} parent=1 // pred_region
      %350 = dma.done [#allocation4], 128
    $region29: #{neural_net_forward.1} parent=1 // pred_fallthru
      _
    %351 = vsyncpa [#allocation3], 1
    %352 = vsyncpa [#allocation6], 1
    %353 = vsyncpa [#allocation4], 1

</llo_original>
